<compile_context>
chip_gen: v5e
topology: v5e:2x2
jax: 0.10.0
libtpu: 0.0.40
codegen_flags: <defaults>
</compile_context>

<pallas_src>
import functools
import math

import jax
import jax.numpy as jnp
from jax.experimental import pallas as pl
from jax.experimental.pallas import tpu as pltpu


def _seamless_linear_kernel(x_ref, wt_ref, b_ref, o_ref, *, n, bblk):
    # x_ref  : (bblk, S, H)           S = n*n tokens per image
    # wt_ref : (H, H)                 pre-transposed weight, (in, out) layout
    # b_ref  : (1, H)                 bias
    # o_ref  : (bblk, (n+2)**2, H)    flattened toroidally-wrapped output
    S = n * n
    H = x_ref.shape[-1]
    W = n + 2

    # One MXU matmul over all bblk*S tokens (M = bblk*S).  The reshape is a
    # pure relabel (bblk > 1 only when S % 8 == 0, so vreg tiling is unchanged).
    x = x_ref[...].reshape(bblk * S, H)
    y = jnp.dot(x, wt_ref[...], preferred_element_type=jnp.float32)
    y = (y + b_ref[...]).astype(o_ref.dtype)            # (M, H), f32 accumulate
    y3 = y.reshape(bblk, S, H)                           # free relabel back

    # Toroidal wrap, written directly in the flattened (row*(n+2)+col) layout.
    # Output super-row out_r uses source row group src_r = (out_r - 1) mod n
    # and equals [src col n-1 | src cols 0..n-1 | src col 0].
    # 3 region stores per super-row, each covering all bblk images at once.
    def store_row(src_r, out_r):
        sb = src_r * n                                   # static (n is a trace const)
        ob = out_r * W
        o_ref[:, ob + 1:ob + 1 + n, :] = y3[:, sb:sb + n, :]        # interior cols
        o_ref[:, ob:ob + 1, :] = y3[:, sb + n - 1:sb + n, :]        # left wrap col
        o_ref[:, ob + n + 1:ob + n + 2, :] = y3[:, sb:sb + 1, :]    # right wrap col

    store_row(n - 1, 0)                # top wrap row (source row n-1)
    for r in range(n):                 # interior rows (static unroll; n is small)
        store_row(r, r + 1)
    store_row(0, n + 1)                # bottom wrap row (source row 0)
    # NOTE: for large n (>~32) this unrolled scatter should land y3 in a VMEM
    # scratch and loop with lax.fori_loop to bound code size / vreg pressure.


def _pick_bblk(B, S, m_target=256):
    """Images per grid step: fill the MXU (M = bblk*S ~ m_target) while keeping
    >= 2 grid steps (v7x megacore) and requiring bblk | B."""
    if B <= 1 or S % 8 != 0:
        return 1
    want = max(1, -(-m_target // S))           # cdiv(m_target, S)
    want = min(want, max(1, B // 2), B)
    for d in range(want, 0, -1):
        if B % d == 0:
            return d
    return 1


def _vmem_limit_bytes(bblk, S, H, n, itemsize):
    x_blk = bblk * S * H * itemsize
    o_blk = bblk * (n + 2) ** 2 * H * itemsize
    w_res = H * H * itemsize + H * itemsize    # resident weight + bias
    y_tmp = bblk * S * H * 4                   # f32 matmul result temporary
    need = 2 * (x_blk + o_blk) + 2 * w_res + y_tmp + (2 << 20)
    try:
        cap = pltpu.get_tpu_info().vmem_capacity_bytes   # 64 MiB v7x, 128 MiB v5e/v6e
    except Exception:
        cap = 64 << 20
    return int(min(max(need, 4 << 20), max(cap - (8 << 20), 4 << 20)))


def seamless_linear(x, w, b):
    """Pallas equivalent of SeamlessWrapper(nn.Linear(H, H)).forward(x).

    x : (B, S, H) with S a perfect square.  Returns (B, (sqrt(S)+2)**2, H).
    Non-3D input or non-square S falls back to the plain Linear (mirrors the
    module's warning path where wrapping is skipped).
    """
    if x.ndim != 3:
        return x @ w.T + b
    B, S, H = x.shape
    n = math.isqrt(S)
    if n * n != S:
        return x @ w.T + b

    bblk = _pick_bblk(B, S)
    grid = B // bblk
    wt = w.T                       # one-time (out,in)->(in,out); never transposed in-kernel
    b2 = b.reshape(1, H)
    out_len = (n + 2) * (n + 2)

    return pl.pallas_call(
        functools.partial(_seamless_linear_kernel, n=n, bblk=bblk),
        out_shape=jax.ShapeDtypeStruct((B, out_len, H), x.dtype),
        grid_spec=pltpu.PrefetchScalarGridSpec(
            num_scalar_prefetch=0,
            grid=(grid,),
            in_specs=[
                pl.BlockSpec((bblk, S, H), lambda i: (i, 0, 0)),
                pl.BlockSpec((H, H), lambda i: (0, 0)),   # resident weight
                pl.BlockSpec((1, H), lambda i: (0, 0)),   # resident bias
            ],
            out_specs=pl.BlockSpec((bblk, out_len, H), lambda i: (i, 0, 0)),
        ),
        compiler_params=pltpu.CompilerParams(
            dimension_semantics=("parallel",),
            vmem_limit_bytes=_vmem_limit_bytes(
                bblk, S, H, n, jnp.dtype(x.dtype).itemsize)),
    )(x, wt, b2)


def _reference(x, w, b):
    """Pure-JAX reference of SeamlessWrapper(Linear)."""
    B, S, H = x.shape
    n = math.isqrt(S)
    y = x @ w.T + b
    y4 = y.reshape(B, n, n, H)
    y4 = jnp.concatenate([y4[:, :, -1:], y4, y4[:, :, :1]], axis=2)   # col wrap
    y4 = jnp.concatenate([y4[:, -1:], y4, y4[:, :1]], axis=1)         # row wrap
    return y4.reshape(B, (n + 2) ** 2, H)


if __name__ == "__main__":
    B, S, H = 2, 16, 128   # seq_len = 16 is a perfect square (n = 4); H lane-dense
    key = jax.random.PRNGKey(0)
    kx, kw, kb = jax.random.split(key, 3)
    x = jax.random.normal(kx, (B, S, H), dtype=jnp.float32)
    w = jax.random.normal(kw, (H, H), dtype=jnp.float32) * 0.05
    b = jax.random.normal(kb, (H,), dtype=jnp.float32) * 0.01

    out = jax.block_until_ready(seamless_linear(x, w, b))

    ref = _reference(x, w, b)
    n = math.isqrt(S)
    assert out.shape == (B, (n + 2) ** 2, H), out.shape
    assert jnp.allclose(out, ref, atol=1e-4, rtol=1e-4), "mismatch vs reference"
    print("KERNEL_OK")
</pallas_src>

<mosaic_0001>
module attributes {stable_mosaic.version = 11 : i64} {
  func.func @_seamless_linear_kernel(%arg0: i32, %arg1: memref<1x16x128xf32, #tpu.memory_space<vmem>>, %arg2: memref<128x128xf32, #tpu.memory_space<vmem>>, %arg3: memref<1x128xf32, #tpu.memory_space<vmem>>, %arg4: memref<1x36x128xf32, #tpu.memory_space<vmem>>) attributes {dimension_semantics = [#tpu.dimension_semantics<parallel>], iteration_bounds = array<i64: 2>, scalar_prefetch = 0 : i64, scratch_operands = 0 : i64, tpu.core_type = #tpu.core_type<tc>, window_params = [{transform_indices = @transform_0, window_bounds = array<i64: 1, 16, 128>}, {pipeline_mode = #tpu.pipeline_mode<synchronous>, transform_indices = @transform_1, window_bounds = array<i64: 128, 128>}, {pipeline_mode = #tpu.pipeline_mode<synchronous>, transform_indices = @transform_2, window_bounds = array<i64: 1, 128>}, {transform_indices = @transform_3, window_bounds = array<i64: 1, 36, 128>}]} {
    %c0 = arith.constant 0 : index
    %c0_0 = arith.constant 0 : index
    %c0_1 = arith.constant 0 : index
    %0 = vector.load %arg1[%c0, %c0_0, %c0_1] : memref<1x16x128xf32, #tpu.memory_space<vmem>>, vector<1x16x128xf32>
    %1 = vector.shape_cast %0 : vector<1x16x128xf32> to vector<16x128xf32>
    %c0_2 = arith.constant 0 : index
    %c0_3 = arith.constant 0 : index
    %2 = vector.load %arg2[%c0_2, %c0_3] : memref<128x128xf32, #tpu.memory_space<vmem>>, vector<128x128xf32>
    %cst = arith.constant dense<0.000000e+00> : vector<16x128xf32>
    %3 = tpu.matmul %1, %2, %cst {dimension_numbers = #tpu.dot_dimension_numbers<[1], [0], [0], [1], [0, 0, 1, 1], [], []>} : vector<16x128xf32>, vector<128x128xf32>, vector<16x128xf32> -> vector<16x128xf32>
    %c0_4 = arith.constant 0 : index
    %c0_5 = arith.constant 0 : index
    %4 = vector.load %arg3[%c0_4, %c0_5] : memref<1x128xf32, #tpu.memory_space<vmem>>, vector<1x128xf32>
    %5 = vector.broadcast %4 : vector<1x128xf32> to vector<16x128xf32>
    %6 = arith.addf %3, %5 : vector<16x128xf32>
    %7 = vector.shape_cast %6 : vector<16x128xf32> to vector<1x16x128xf32>
    %8 = vector.extract_strided_slice %7 {offsets = [0, 12, 0], sizes = [1, 4, 128], strides = [1, 1, 1]} : vector<1x16x128xf32> to vector<1x4x128xf32>
    %c0_6 = arith.constant 0 : index
    %c1 = arith.constant 1 : index
    %c0_7 = arith.constant 0 : index
    %9 = vector.load %arg4[%c0_6, %c1, %c0_7] : memref<1x36x128xf32, #tpu.memory_space<vmem>>, vector<1x4x128xf32>
    tpu.vector_store %arg4[%c0_6, %c1, %c0_7], %8 {strides = array<i32>} : memref<1x36x128xf32, #tpu.memory_space<vmem>>, vector<1x4x128xf32>,
    %10 = vector.extract_strided_slice %7 {offsets = [0, 15, 0], sizes = [1, 1, 128], strides = [1, 1, 1]} : vector<1x16x128xf32> to vector<1x1x128xf32>
    %c0_8 = arith.constant 0 : index
    %c0_9 = arith.constant 0 : index
    %c0_10 = arith.constant 0 : index
    %11 = vector.load %arg4[%c0_8, %c0_9, %c0_10] : memref<1x36x128xf32, #tpu.memory_space<vmem>>, vector<1x1x128xf32>
    tpu.vector_store %arg4[%c0_8, %c0_9, %c0_10], %10 {strides = array<i32>} : memref<1x36x128xf32, #tpu.memory_space<vmem>>, vector<1x1x128xf32>,
    %12 = vector.extract_strided_slice %7 {offsets = [0, 12, 0], sizes = [1, 1, 128], strides = [1, 1, 1]} : vector<1x16x128xf32> to vector<1x1x128xf32>
    %c0_11 = arith.constant 0 : index
    %c5 = arith.constant 5 : index
    %c0_12 = arith.constant 0 : index
    %13 = vector.load %arg4[%c0_11, %c5, %c0_12] : memref<1x36x128xf32, #tpu.memory_space<vmem>>, vector<1x1x128xf32>
    tpu.vector_store %arg4[%c0_11, %c5, %c0_12], %12 {strides = array<i32>} : memref<1x36x128xf32, #tpu.memory_space<vmem>>, vector<1x1x128xf32>,
    %14 = vector.extract_strided_slice %7 {offsets = [0, 0, 0], sizes = [1, 4, 128], strides = [1, 1, 1]} : vector<1x16x128xf32> to vector<1x4x128xf32>
    %c0_13 = arith.constant 0 : index
    %c7 = arith.constant 7 : index
    %c0_14 = arith.constant 0 : index
    %15 = vector.load %arg4[%c0_13, %c7, %c0_14] : memref<1x36x128xf32, #tpu.memory_space<vmem>>, vector<1x4x128xf32>
    tpu.vector_store %arg4[%c0_13, %c7, %c0_14], %14 {strides = array<i32>} : memref<1x36x128xf32, #tpu.memory_space<vmem>>, vector<1x4x128xf32>,
    %16 = vector.extract_strided_slice %7 {offsets = [0, 3, 0], sizes = [1, 1, 128], strides = [1, 1, 1]} : vector<1x16x128xf32> to vector<1x1x128xf32>
    %c0_15 = arith.constant 0 : index
    %c6 = arith.constant 6 : index
    %c0_16 = arith.constant 0 : index
    %17 = vector.load %arg4[%c0_15, %c6, %c0_16] : memref<1x36x128xf32, #tpu.memory_space<vmem>>, vector<1x1x128xf32>
    tpu.vector_store %arg4[%c0_15, %c6, %c0_16], %16 {strides = array<i32>} : memref<1x36x128xf32, #tpu.memory_space<vmem>>, vector<1x1x128xf32>,
    %18 = vector.extract_strided_slice %7 {offsets = [0, 0, 0], sizes = [1, 1, 128], strides = [1, 1, 1]} : vector<1x16x128xf32> to vector<1x1x128xf32>
    %c0_17 = arith.constant 0 : index
    %c11 = arith.constant 11 : index
    %c0_18 = arith.constant 0 : index
    %19 = vector.load %arg4[%c0_17, %c11, %c0_18] : memref<1x36x128xf32, #tpu.memory_space<vmem>>, vector<1x1x128xf32>
    tpu.vector_store %arg4[%c0_17, %c11, %c0_18], %18 {strides = array<i32>} : memref<1x36x128xf32, #tpu.memory_space<vmem>>, vector<1x1x128xf32>,
    %20 = vector.extract_strided_slice %7 {offsets = [0, 4, 0], sizes = [1, 4, 128], strides = [1, 1, 1]} : vector<1x16x128xf32> to vector<1x4x128xf32>
    %c0_19 = arith.constant 0 : index
    %c13 = arith.constant 13 : index
    %c0_20 = arith.constant 0 : index
    %21 = vector.load %arg4[%c0_19, %c13, %c0_20] : memref<1x36x128xf32, #tpu.memory_space<vmem>>, vector<1x4x128xf32>
    tpu.vector_store %arg4[%c0_19, %c13, %c0_20], %20 {strides = array<i32>} : memref<1x36x128xf32, #tpu.memory_space<vmem>>, vector<1x4x128xf32>,
    %22 = vector.extract_strided_slice %7 {offsets = [0, 7, 0], sizes = [1, 1, 128], strides = [1, 1, 1]} : vector<1x16x128xf32> to vector<1x1x128xf32>
    %c0_21 = arith.constant 0 : index
    %c12 = arith.constant 12 : index
    %c0_22 = arith.constant 0 : index
    %23 = vector.load %arg4[%c0_21, %c12, %c0_22] : memref<1x36x128xf32, #tpu.memory_space<vmem>>, vector<1x1x128xf32>
    tpu.vector_store %arg4[%c0_21, %c12, %c0_22], %22 {strides = array<i32>} : memref<1x36x128xf32, #tpu.memory_space<vmem>>, vector<1x1x128xf32>,
    %24 = vector.extract_strided_slice %7 {offsets = [0, 4, 0], sizes = [1, 1, 128], strides = [1, 1, 1]} : vector<1x16x128xf32> to vector<1x1x128xf32>
    %c0_23 = arith.constant 0 : index
    %c17 = arith.constant 17 : index
    %c0_24 = arith.constant 0 : index
    %25 = vector.load %arg4[%c0_23, %c17, %c0_24] : memref<1x36x128xf32, #tpu.memory_space<vmem>>, vector<1x1x128xf32>
    tpu.vector_store %arg4[%c0_23, %c17, %c0_24], %24 {strides = array<i32>} : memref<1x36x128xf32, #tpu.memory_space<vmem>>, vector<1x1x128xf32>,
    %26 = vector.extract_strided_slice %7 {offsets = [0, 8, 0], sizes = [1, 4, 128], strides = [1, 1, 1]} : vector<1x16x128xf32> to vector<1x4x128xf32>
    %c0_25 = arith.constant 0 : index
    %c19 = arith.constant 19 : index
    %c0_26 = arith.constant 0 : index
    %27 = vector.load %arg4[%c0_25, %c19, %c0_26] : memref<1x36x128xf32, #tpu.memory_space<vmem>>, vector<1x4x128xf32>
    tpu.vector_store %arg4[%c0_25, %c19, %c0_26], %26 {strides = array<i32>} : memref<1x36x128xf32, #tpu.memory_space<vmem>>, vector<1x4x128xf32>,
    %28 = vector.extract_strided_slice %7 {offsets = [0, 11, 0], sizes = [1, 1, 128], strides = [1, 1, 1]} : vector<1x16x128xf32> to vector<1x1x128xf32>
    %c0_27 = arith.constant 0 : index
    %c18 = arith.constant 18 : index
    %c0_28 = arith.constant 0 : index
    %29 = vector.load %arg4[%c0_27, %c18, %c0_28] : memref<1x36x128xf32, #tpu.memory_space<vmem>>, vector<1x1x128xf32>
    tpu.vector_store %arg4[%c0_27, %c18, %c0_28], %28 {strides = array<i32>} : memref<1x36x128xf32, #tpu.memory_space<vmem>>, vector<1x1x128xf32>,
    %30 = vector.extract_strided_slice %7 {offsets = [0, 8, 0], sizes = [1, 1, 128], strides = [1, 1, 1]} : vector<1x16x128xf32> to vector<1x1x128xf32>
    %c0_29 = arith.constant 0 : index
    %c23 = arith.constant 23 : index
    %c0_30 = arith.constant 0 : index
    %31 = vector.load %arg4[%c0_29, %c23, %c0_30] : memref<1x36x128xf32, #tpu.memory_space<vmem>>, vector<1x1x128xf32>
    tpu.vector_store %arg4[%c0_29, %c23, %c0_30], %30 {strides = array<i32>} : memref<1x36x128xf32, #tpu.memory_space<vmem>>, vector<1x1x128xf32>,
    %32 = vector.extract_strided_slice %7 {offsets = [0, 12, 0], sizes = [1, 4, 128], strides = [1, 1, 1]} : vector<1x16x128xf32> to vector<1x4x128xf32>
    %c0_31 = arith.constant 0 : index
    %c25 = arith.constant 25 : index
    %c0_32 = arith.constant 0 : index
    %33 = vector.load %arg4[%c0_31, %c25, %c0_32] : memref<1x36x128xf32, #tpu.memory_space<vmem>>, vector<1x4x128xf32>
    tpu.vector_store %arg4[%c0_31, %c25, %c0_32], %32 {strides = array<i32>} : memref<1x36x128xf32, #tpu.memory_space<vmem>>, vector<1x4x128xf32>,
    %34 = vector.extract_strided_slice %7 {offsets = [0, 15, 0], sizes = [1, 1, 128], strides = [1, 1, 1]} : vector<1x16x128xf32> to vector<1x1x128xf32>
    %c0_33 = arith.constant 0 : index
    %c24 = arith.constant 24 : index
    %c0_34 = arith.constant 0 : index
    %35 = vector.load %arg4[%c0_33, %c24, %c0_34] : memref<1x36x128xf32, #tpu.memory_space<vmem>>, vector<1x1x128xf32>
    tpu.vector_store %arg4[%c0_33, %c24, %c0_34], %34 {strides = array<i32>} : memref<1x36x128xf32, #tpu.memory_space<vmem>>, vector<1x1x128xf32>,
    %36 = vector.extract_strided_slice %7 {offsets = [0, 12, 0], sizes = [1, 1, 128], strides = [1, 1, 1]} : vector<1x16x128xf32> to vector<1x1x128xf32>
    %c0_35 = arith.constant 0 : index
    %c29 = arith.constant 29 : index
    %c0_36 = arith.constant 0 : index
    %37 = vector.load %arg4[%c0_35, %c29, %c0_36] : memref<1x36x128xf32, #tpu.memory_space<vmem>>, vector<1x1x128xf32>
    tpu.vector_store %arg4[%c0_35, %c29, %c0_36], %36 {strides = array<i32>} : memref<1x36x128xf32, #tpu.memory_space<vmem>>, vector<1x1x128xf32>,
    %38 = vector.extract_strided_slice %7 {offsets = [0, 0, 0], sizes = [1, 4, 128], strides = [1, 1, 1]} : vector<1x16x128xf32> to vector<1x4x128xf32>
    %c0_37 = arith.constant 0 : index
    %c31 = arith.constant 31 : index
    %c0_38 = arith.constant 0 : index
    %39 = vector.load %arg4[%c0_37, %c31, %c0_38] : memref<1x36x128xf32, #tpu.memory_space<vmem>>, vector<1x4x128xf32>
    tpu.vector_store %arg4[%c0_37, %c31, %c0_38], %38 {strides = array<i32>} : memref<1x36x128xf32, #tpu.memory_space<vmem>>, vector<1x4x128xf32>,
    %40 = vector.extract_strided_slice %7 {offsets = [0, 3, 0], sizes = [1, 1, 128], strides = [1, 1, 1]} : vector<1x16x128xf32> to vector<1x1x128xf32>
    %c0_39 = arith.constant 0 : index
    %c30 = arith.constant 30 : index
    %c0_40 = arith.constant 0 : index
    %41 = vector.load %arg4[%c0_39, %c30, %c0_40] : memref<1x36x128xf32, #tpu.memory_space<vmem>>, vector<1x1x128xf32>
    tpu.vector_store %arg4[%c0_39, %c30, %c0_40], %40 {strides = array<i32>} : memref<1x36x128xf32, #tpu.memory_space<vmem>>, vector<1x1x128xf32>,
    %42 = vector.extract_strided_slice %7 {offsets = [0, 0, 0], sizes = [1, 1, 128], strides = [1, 1, 1]} : vector<1x16x128xf32> to vector<1x1x128xf32>
    %c0_41 = arith.constant 0 : index
    %c35 = arith.constant 35 : index
    %c0_42 = arith.constant 0 : index
    %43 = vector.load %arg4[%c0_41, %c35, %c0_42] : memref<1x36x128xf32, #tpu.memory_space<vmem>>, vector<1x1x128xf32>
    tpu.vector_store %arg4[%c0_41, %c35, %c0_42], %42 {strides = array<i32>} : memref<1x36x128xf32, #tpu.memory_space<vmem>>, vector<1x1x128xf32>,
    return
  }
  func.func @transform_0(%arg0: i32) -> (i32, i32, i32) {
    %c0_i32 = arith.constant 0 : i32
    %c0_i32_0 = arith.constant 0 : i32
    %c0_i32_1 = arith.constant 0 : i32
    return %arg0, %c0_i32, %c0_i32_0 : i32, i32, i32
  }
  func.func @transform_1(%arg0: i32) -> (i32, i32) {
    %c0_i32 = arith.constant 0 : i32
    %c0_i32_0 = arith.constant 0 : i32
    %c0_i32_1 = arith.constant 0 : i32
    return %c0_i32, %c0_i32_0 : i32, i32
  }
  func.func @transform_2(%arg0: i32) -> (i32, i32) {
    %c0_i32 = arith.constant 0 : i32
    %c0_i32_0 = arith.constant 0 : i32
    %c0_i32_1 = arith.constant 0 : i32
    return %c0_i32, %c0_i32_0 : i32, i32
  }
  func.func @transform_3(%arg0: i32) -> (i32, i32, i32) {
    %c0_i32 = arith.constant 0 : i32
    %c0_i32_0 = arith.constant 0 : i32
    %c0_i32_1 = arith.constant 0 : i32
    return %arg0, %c0_i32, %c0_i32_0 : i32, i32, i32
  }
}

</mosaic_0001>

<llo_original>
// kernel: tpu_custom_call.1
$region0: #{tpu_custom_call.1}
  #allocation0 [shape = 'u32[]', space=smem, size = 0x4, offset = 0x4, fixed_abs, tag = 'smem constant byte address 0x4 - core index']
  #allocation1 [shape = 'u32[72,128]{1,0:T(1,128)}', space=vmem, size = 0x9000, scoped, tag = 'internal scratch']
  %s0 = inlined_call_operand.hbm [shape: f32[2,16,128], index: 0, kind: input, shape index: {}]
  %s1 = inlined_call_operand.hbm [shape: f32[128,128], index: 1, kind: input, shape index: {}]
  %s2 = inlined_call_operand.vmem [shape: f32[1,128], index: 2, kind: input, shape index: {}]
  %s3 = inlined_call_operand.vmem [shape: f32[2,36,128], index: 3, kind: output, shape index: {}]
  %s4 = sld [smem:[#allocation0]]
  $region53: #{tpu_custom_call.1} parent=0
    _
  %s6 = ssub.s32 1, %s4
  %s7 = scalar_select 0, %s6, %s4
  $region1: #{tpu_custom_call.1} parent=0
    #allocation2 [shape = 'u8[16384]{0}', space=vmem, size = 0x4000, scoped, tag = 'input window, operand 0']
    #allocation3 [shape = 's32[2]{0}', space=sflag, size = 0x8, scoped, tag = 'scoped memory for tpu_custom_call.1']
    #allocation4 [shape = 'u8[65536]{0}', space=vmem, size = 0x10000, scoped, tag = 'input window, operand 1, single buffered']
    #allocation5 [shape = 's32[1]{0}', space=sflag, size = 0x4, scoped, tag = 'scoped memory for tpu_custom_call.1']
    %8 = vsyncpa [#allocation3], 0
    %s9 = scalar_lea.sflag [#allocation3], 1
    %10 = vsyncpa %s9, 0
    %11 = vsyncpa [#allocation5], 0
    loop: start=0, step=1, limit=4
    $region2: #{tpu_custom_call.1} parent=1 // loop_pre_header
      _
    $region3: #{tpu_custom_call.1} parent=1 // loop_header
      %s13 = sphi 0, %s17
      %p14 = scmp.ge.s32.totalorder %s13, 4
      %s23 = sphi 0, %s25
      %s26 = sphi 0, %s23
      %s27 = sphi 0, %s26
      %s43 = sphi 0, %s27
      %s47 = sphi 0, %s47
      %s49 = sphi 0, %s47
      %s50 = sphi 0, %s49
      %s64 = sphi 0, %s50
      %s68 = sphi 0, %s68
      %s70 = sphi 0, %s68
      %s71 = sphi 0, %s70
      %s85 = sphi 0, %s71
      %s91 = sphi 0, %s93
      %s94 = sphi 0, %s91
      %s95 = sphi 0, %s94
      %s111 = sphi 0, %s95
    $region4: #{tpu_custom_call.1} parent=1 // loop_header_branch
      %16 = sbr.rel (%p14) target = $region8
    $region5: #{tpu_custom_call.1} parent=1 // loop_body
      %s18 = ssub.s32 %s13, 1
      %s19 = ssub.s32 %s13, 2
      %s20 = sadd.s32 %s13, 1
      %s21 = ssub.s32 %s13, %s20
      %p22 = scmp.eq.s32.totalorder %s21, 0
      %s24 = sadd.s32 %s23, 1
      %s25 = scalar_select %p22, %s23, %s24
      %p28 = pneg %p22
      %p29 = scmp.eq.s32.totalorder %s13, 1
      %p30 = por %p28, %p29
      %p31 = scmp.ne.s32.totalorder %s23, %s26
      %p32 = scmp.eq.s32.totalorder %s13, 0
      %p33 = por %p31, %p32
      %p34 = scmp.ne.s32.totalorder %s23, %s26
      %p35 = scmp.eq.s32.totalorder %s18, 1
      %p36 = por %p34, %p35
      %p37 = scmp.ne.s32.totalorder %s26, %s27
      %p38 = scmp.eq.s32.totalorder %s18, 0
      %p39 = por %p37, %p38
      %p40 = scmp.ne.s32.totalorder %s26, %s27
      %p41 = scmp.eq.s32.totalorder %s19, 1
      %p42 = por %p40, %p41
      %p44 = scmp.ne.s32.totalorder %s27, %s43
      %p45 = scmp.eq.s32.totalorder %s19, 0
      %p46 = por %p44, %p45
      %s48 = sadd.s32 %s47, 1
      %p51 = scmp.eq.s32.totalorder %s13, 1
      %p52 = scmp.ne.s32.totalorder %s47, %s49
      %p53 = scmp.eq.s32.totalorder %s13, 0
      %p54 = por %p52, %p53
      %p55 = scmp.ne.s32.totalorder %s47, %s49
      %p56 = scmp.eq.s32.totalorder %s18, 1
      %p57 = por %p55, %p56
      %p58 = scmp.ne.s32.totalorder %s49, %s50
      %p59 = scmp.eq.s32.totalorder %s18, 0
      %p60 = por %p58, %p59
      %p61 = scmp.ne.s32.totalorder %s49, %s50
      %p62 = scmp.eq.s32.totalorder %s19, 1
      %p63 = por %p61, %p62
      %p65 = scmp.ne.s32.totalorder %s50, %s64
      %p66 = scmp.eq.s32.totalorder %s19, 0
      %p67 = por %p65, %p66
      %s69 = sadd.s32 %s68, 1
      %p72 = scmp.eq.s32.totalorder %s13, 1
      %p73 = scmp.ne.s32.totalorder %s68, %s70
      %p74 = scmp.eq.s32.totalorder %s13, 0
      %p75 = por %p73, %p74
      %p76 = scmp.ne.s32.totalorder %s68, %s70
      %p77 = scmp.eq.s32.totalorder %s18, 1
      %p78 = por %p76, %p77
      %p79 = scmp.ne.s32.totalorder %s70, %s71
      %p80 = scmp.eq.s32.totalorder %s18, 0
      %p81 = por %p79, %p80
      %p82 = scmp.ne.s32.totalorder %s70, %s71
      %p83 = scmp.eq.s32.totalorder %s19, 1
      %p84 = por %p82, %p83
      %p86 = scmp.ne.s32.totalorder %s71, %s85
      %p87 = scmp.eq.s32.totalorder %s19, 0
      %p88 = por %p86, %p87
      %s89 = ssub.s32 %s13, %s20
      %p90 = scmp.eq.s32.totalorder %s89, 0
      %s92 = sadd.s32 %s91, 1
      %s93 = scalar_select %p90, %s91, %s92
      %p96 = pneg %p90
      %p97 = scmp.eq.s32.totalorder %s13, 1
      %p98 = por %p96, %p97
      %p99 = scmp.ne.s32.totalorder %s91, %s94
      %p100 = scmp.eq.s32.totalorder %s13, 0
      %p101 = por %p99, %p100
      %p102 = scmp.ne.s32.totalorder %s91, %s94
      %p103 = scmp.eq.s32.totalorder %s18, 1
      %p104 = por %p102, %p103
      %p105 = scmp.ne.s32.totalorder %s94, %s95
      %p106 = scmp.eq.s32.totalorder %s18, 0
      %p107 = por %p105, %p106
      %p108 = scmp.ne.s32.totalorder %s94, %s95
      %p109 = scmp.eq.s32.totalorder %s19, 1
      %p110 = por %p108, %p109
      %p112 = scmp.ne.s32.totalorder %s95, %s111
      %p113 = scmp.eq.s32.totalorder %s19, 0
      %p114 = por %p112, %p113
      %p115 = scmp.le.s32.totalorder 1, %s13
      %p116 = scmp.lt.s32.totalorder %s13, 3
      %p117 = pnand %p115, %p116
      %p118 = pneg %p117
      // Predicated region
      $region9: #{tpu_custom_call.1} parent=5 // pred_check
        _
      $region10: #{tpu_custom_call.1} parent=5 // pred_check_branch
        %120 = sbr.rel (%p117) target = $region12
      $region11: #{tpu_custom_call.1} parent=5 // pred_region
        %s121 = ssub.s32 %s13, 1
        // Predicated region
        $region13: #{tpu_custom_call.1} parent=11 // pred_check
          %p122 = pneg %p60
        $region14: #{tpu_custom_call.1} parent=11 // pred_check_branch
          %124 = sbr.rel (%p122) target = $region16
        $region15: #{tpu_custom_call.1} parent=11 // pred_region
          %126 = vsyncadd [#allocation5], 0
          %s127 = sshll.u32 %s1, 4
          %s128 = int_to_ptr.hbm [resolvable:$true] %s127
          %s129 = sshll.u32 [#allocation4], 4
          %s130 = int_to_ptr.vmem [resolvable:$true] %s129
          %135 = dma.hbm_to_vmem [thread:$0]  %s128, 2048, %s130, [#allocation5], 128, 128, 8
        $region16: #{tpu_custom_call.1} parent=11 // pred_fallthru
          _
        // Predicated region
        $region17: #{tpu_custom_call.1} parent=11 // pred_check
          %p136 = pneg %p81
        $region18: #{tpu_custom_call.1} parent=11 // pred_check_branch
          %138 = sbr.rel (%p136) target = $region20
        $region19: #{tpu_custom_call.1} parent=11 // pred_region
          _
        $region20: #{tpu_custom_call.1} parent=11 // pred_fallthru
          _
      $region12: #{tpu_custom_call.1} parent=5 // pred_fallthru
        _
      %p139 = scmp.lt.s32.totalorder %s13, 2
      // Predicated region
      $region21: #{tpu_custom_call.1} parent=5 // pred_check
        %p140 = pneg %p139
      $region22: #{tpu_custom_call.1} parent=5 // pred_check_branch
        %142 = sbr.rel (%p140) target = $region24
      $region23: #{tpu_custom_call.1} parent=5 // pred_region
        // Predicated region
        $region25: #{tpu_custom_call.1} parent=23 // pred_check
          %p143 = pneg %p33
        $region26: #{tpu_custom_call.1} parent=23 // pred_check_branch
          %145 = sbr.rel (%p143) target = $region28
        $region27: #{tpu_custom_call.1} parent=23 // pred_region
          %s146 = sand.u32 %s23, 1
          %s147 = scalar_lea.sflag [#allocation3], %s146
          %s148 = sand.u32 %s23, 1
          %s149 = smul.addr %s148, 16
          %s150 = scalar_lea.vmem [#allocation2], %s149
          %152 = vsyncadd %s147, 0
          %s153 = smul.addr %s13, 2
          %s154 = smul.addr %s153, 8
          %s155 = scalar_lea.hbm %s0, %s154
          %s156 = sshll.u32 %s155, 4
          %s157 = int_to_ptr.hbm [resolvable:$true] %s156
          %s158 = sshll.u32 %s150, 4
          %s159 = int_to_ptr.vmem [resolvable:$true] %s158
          %164 = dma.hbm_to_vmem [thread:$0]  %s157, 256, %s159, %s147, 128, 128, 8
        $region28: #{tpu_custom_call.1} parent=23 // pred_fallthru
          _
      $region24: #{tpu_custom_call.1} parent=5 // pred_fallthru
        _
      %p165 = scmp.le.s32.totalorder 1, %s13
      %p166 = scmp.lt.s32.totalorder %s13, 3
      %p167 = pnand %p165, %p166
      %p168 = pneg %p167
      // Predicated region
      $region29: #{tpu_custom_call.1} parent=5 // pred_check
        _
      $region30: #{tpu_custom_call.1} parent=5 // pred_check_branch
        %170 = sbr.rel (%p167) target = $region32
      $region31: #{tpu_custom_call.1} parent=5 // pred_region
        %s171 = ssub.s32 %s13, 1
        %s172 = sand.u32 %s26, 1
        %s173 = scalar_lea.sflag [#allocation3], %s172
        %s174 = sand.u32 %s26, 1
        %s175 = smul.addr %s174, 16
        %s176 = scalar_lea.vmem [#allocation2], %s175
        // Predicated region
        $region33: #{tpu_custom_call.1} parent=31 // pred_check
          %p177 = pneg %p39
        $region34: #{tpu_custom_call.1} parent=31 // pred_check_branch
          %179 = sbr.rel (%p177) target = $region36
        $region35: #{tpu_custom_call.1} parent=31 // pred_region
          %181 = dma.done %s173, 256
        $region36: #{tpu_custom_call.1} parent=31 // pred_fallthru
          _
        // Predicated region
        $region37: #{tpu_custom_call.1} parent=31 // pred_check
          %p182 = pneg %p60
        $region38: #{tpu_custom_call.1} parent=31 // pred_check_branch
          %184 = sbr.rel (%p182) target = $region40
        $region39: #{tpu_custom_call.1} parent=31 // pred_region
          %186 = dma.done [#allocation5], 2048
        $region40: #{tpu_custom_call.1} parent=31 // pred_fallthru
          _
        %s187 = sand.u32 %s26, 1
        %s188 = scalar_lea.sflag [#allocation3], %s187
        %s189 = sand.u32 %s26, 1
        %s190 = smul.addr %s189, 16
        %s191 = scalar_lea.vmem [#allocation2], %s190
        %p192 = pneg %p39
        %p193 = pneg %p36
        %p194 = pneg %p60
        %p195 = pneg %p57
        %p196 = pneg %p81
        %p197 = pneg %p78
        %p198 = pneg %p107
        %p199 = pneg %p104
        %p200 = scmp.lt.s32.totalorder %s18, 1
        %s201 = scalar_select %p200, %s18, 1
        %s202 = smul.addr %s201, 5
        %s203 = smul.addr %s202, 8
        %s204 = scalar_lea.vmem %s3, %s203
        %p205 = scmp.lt.s32.totalorder %s18, 1
        %s206 = scalar_select %p205, %s18, 1
        %s207 = smul.addr %s206, 5
        %s208 = smul.addr %s207, 8
        %s209 = scalar_lea.vmem %s3, %s208
        %v210 = vld [vmem:[%s176] sm:$0xff]
        %v211 = vld [vmem:[%s176 + $0x8] sm:$0xff]
        %v212 = vld [vmem:[#allocation4] sm:$0xff]
        %v213 = vld [vmem:[#allocation4 + $0x8] sm:$0xff]
        %v214 = vld [vmem:[#allocation4 + $0x10] sm:$0xff]
        %v215 = vld [vmem:[#allocation4 + $0x18] sm:$0xff]
        %v216 = vld [vmem:[#allocation4 + $0x20] sm:$0xff]
        %v217 = vld [vmem:[#allocation4 + $0x28] sm:$0xff]
        %v218 = vld [vmem:[#allocation4 + $0x30] sm:$0xff]
        %v219 = vld [vmem:[#allocation4 + $0x38] sm:$0xff]
        %v220 = vld [vmem:[#allocation4 + $0x40] sm:$0xff]
        %v221 = vld [vmem:[#allocation4 + $0x48] sm:$0xff]
        %v222 = vld [vmem:[#allocation4 + $0x50] sm:$0xff]
        %v223 = vld [vmem:[#allocation4 + $0x58] sm:$0xff]
        %v224 = vld [vmem:[#allocation4 + $0x60] sm:$0xff]
        %v225 = vld [vmem:[#allocation4 + $0x68] sm:$0xff]
        %v226 = vld [vmem:[#allocation4 + $0x70] sm:$0xff]
        %v227 = vld [vmem:[#allocation4 + $0x78] sm:$0xff]
        %v228 = vld [vmem:[%s2] sm:$0x1]
        %v230 = vperm.slane %v228, 0
        %232 = vmatpush.msra.mxu0 %v227
        %233 = vmatpush.msra.mxu0 %v226
        %234 = vmatpush.msra.mxu0 %v225
        %235 = vmatpush.msra.mxu0 %v224
        %236 = vmatpush.msra.mxu0 %v223
        %237 = vmatpush.msra.mxu0 %v222
        %238 = vmatpush.msra.mxu0 %v221
        %239 = vmatpush.msra.mxu0 %v220
        %240 = vmatpush.msra.mxu0 %v219
        %241 = vmatpush.msra.mxu0 %v218
        %242 = vmatpush.msra.mxu0 %v217
        %243 = vmatpush.msra.mxu0 %v216
        %244 = vmatpush.msra.mxu0 %v215
        %245 = vmatpush.msra.mxu0 %v214
        %246 = vmatpush.msra.mxu0 %v213
        %247 = vmatpush.msra.mxu0 %v212
        %248 = vmatmul.f32.gmra.mxu0 %v210
        %v249 = vpop.f32.mrf.mxu0
        %v250 = vadd.f32 %v230, %v249
        %251 = vmatmul.f32.gmra.mxu0 %v211
        %v252 = vpop.f32.mrf.mxu0
        %v253 = vadd.f32 %v230, %v252
        %254 = vdwg.mxu0
        %255 = vst [vmem:[%s209 - $0x3] sm:$0xf0] %v253
        %256 = vst [vmem:[%s209 - $0x7] sm:$0x80] %v253
        %257 = vst [vmem:[%s209 + $0x1] sm:$0x10] %v253
        %258 = vst [vmem:[%s209 + $0x7] sm:$0xf] %v250
        %259 = vst [vmem:[%s209 + $0x3] sm:$0x8] %v250
        %260 = vst [vmem:[%s209 + $0xb] sm:$0x1] %v250
        %261 = vst [vmem:[%s209 + $0x9] sm:$0xf0] %v250
        %262 = vst [vmem:[%s209 + $0x5] sm:$0x80] %v250
        %263 = vst [vmem:[%s209 + $0xd] sm:$0x10] %v250
        %264 = vst [vmem:[%s209 + $0x13] sm:$0xf] %v253
        %265 = vst [vmem:[%s209 + $0xf] sm:$0x8] %v253
        %266 = vst [vmem:[%s209 + $0x17] sm:$0x1] %v253
        %267 = vst [vmem:[%s209 + $0x15] sm:$0xf0] %v253
        %268 = vst [vmem:[%s209 + $0x11] sm:$0x80] %v253
        %269 = vst [vmem:[%s209 + $0x19] sm:$0x10] %v253
        %270 = vst [vmem:[%s209 + $0x1f] sm:$0xf] %v250
        %271 = vst [vmem:[%s209 + $0x1b] sm:$0x8] %v250
        %272 = vst [vmem:[%s209 + $0x23] sm:$0x1] %v250
        %p273 = scmp.lt.s32.totalorder %s18, 1
        %s274 = scalar_select %p273, %s18, 1
        %s275 = smul.addr %s274, 5
        %s276 = smul.addr %s275, 8
        %s277 = scalar_lea.vmem %s3, %s276
        // Predicated region
        $region41: #{tpu_custom_call.1} parent=31 // pred_check
          %p278 = pneg %p104
        $region42: #{tpu_custom_call.1} parent=31 // pred_check_branch
          %280 = sbr.rel (%p278) target = $region44
        $region43: #{tpu_custom_call.1} parent=31 // pred_region
          _
        $region44: #{tpu_custom_call.1} parent=31 // pred_fallthru
          _
      $region32: #{tpu_custom_call.1} parent=5 // pred_fallthru
        _
      %p281 = scmp.le.s32.totalorder 2, %s13
      // Predicated region
      $region45: #{tpu_custom_call.1} parent=5 // pred_check
        %p282 = pneg %p281
      $region46: #{tpu_custom_call.1} parent=5 // pred_check_branch
        %284 = sbr.rel (%p282) target = $region48
      $region47: #{tpu_custom_call.1} parent=5 // pred_region
        %s285 = ssub.s32 %s13, 2
        // Predicated region
        $region49: #{tpu_custom_call.1} parent=47 // pred_check
          %p286 = pneg %p110
        $region50: #{tpu_custom_call.1} parent=47 // pred_check_branch
          %288 = sbr.rel (%p286) target = $region52
        $region51: #{tpu_custom_call.1} parent=47 // pred_region
          %p289 = scmp.lt.s32.totalorder %s19, 1
          %s290 = scalar_select %p289, %s19, 1
          %s291 = smul.addr %s290, 5
          %s292 = smul.addr %s291, 8
          %s293 = scalar_lea.vmem %s3, %s292
        $region52: #{tpu_custom_call.1} parent=47 // pred_fallthru
          _
      $region48: #{tpu_custom_call.1} parent=5 // pred_fallthru
        _
    $region6: #{tpu_custom_call.1} parent=1 // loop_footer
      %s17 = sadd.s32 1, %s13
    $region7: #{tpu_custom_call.1} parent=1 // loop_footer_branch
      %12 = sbr.rel target = $region3
    $region8: #{tpu_custom_call.1} parent=1 // loop_exit
      _
    %294 = vsyncpa [#allocation3], 1
    %s295 = scalar_lea.sflag [#allocation3], 1
    %296 = vsyncpa %s295, 1
    %297 = vsyncpa [#allocation5], 1

</llo_original>
